<compile_context>
chip_gen: v5e
topology: v5e:2x2
jax: 0.10.0
libtpu: 0.0.40
codegen_flags: <defaults>
</compile_context>

<pallas_src>
import jax
import jax.numpy as jnp
from jax.experimental import pallas as pl
from jax.experimental.pallas import tpu as pltpu

IN_FEATURES = 2
HIDDEN = 64
NUM_CLASSES = 2

HID_PAD = 128      # hidden width padded to one full lane group
OUT_PAD = 128      # output width padded -> lane-dense stores
NEG_BIG = -1e30    # bias for padded logit columns (masked out of log_softmax)
MAX_TB = 2048      # batch tile cap (VMEM-safe on v5e/v6e/v7x)


def _round_up(n, m):
    return ((n + m - 1) // m) * m


def mlp_kernel(x_ref,
               w1_ref, b1_ref,
               w2_ref, b2_ref,
               w3_ref, b3_ref,
               w4_ref, b4_ref,
               o_ref):
    """One batch tile of the full forward pass (all weights VMEM-resident)."""
    x = x_ref[...].astype(jnp.float32)                        # (TB, 2)

    # fc1 + ReLU: K=2 is too small for the MXU -> two VPU broadcast-FMAs.
    h = (x[:, 0:1] * w1_ref[0:1, :]
         + x[:, 1:2] * w1_ref[1:2, :]
         + b1_ref[...])                                        # (TB, 128)
    h = jnp.maximum(h, 0.0)

    # fc2 + ReLU (full 128x128 MXU tile)
    h = jnp.dot(h, w2_ref[...], preferred_element_type=jnp.float32) + b2_ref[...]
    h = jnp.maximum(h, 0.0)

    # fc3 + ReLU
    h = jnp.dot(h, w3_ref[...], preferred_element_type=jnp.float32) + b3_ref[...]
    h = jnp.maximum(h, 0.0)

    # fc4: padded columns carry bias NEG_BIG, so they vanish in the softmax.
    logits = jnp.dot(h, w4_ref[...], preferred_element_type=jnp.float32) + b4_ref[...]

    # Numerically stable log_softmax over the feature axis (exp on EUP slot).
    m = jnp.max(logits, axis=1, keepdims=True)
    shifted = logits - m
    lse = jnp.log(jnp.sum(jnp.exp(shifted), axis=1, keepdims=True))
    o_ref[...] = (shifted - lse).astype(o_ref.dtype)           # (TB, 128) lane-dense store


def _pad_params(params):
    """Zero-pad weights to lane-dense shapes (numerically exact, see notes)."""
    w1 = jnp.pad(params["w1"], ((0, 0), (0, HID_PAD - HIDDEN)))                 # (2, 128)
    b1 = jnp.pad(params["b1"], ((0, 0), (0, HID_PAD - HIDDEN)))                 # (1, 128)
    w2 = jnp.pad(params["w2"], ((0, HID_PAD - HIDDEN), (0, HID_PAD - HIDDEN)))  # (128, 128)
    b2 = jnp.pad(params["b2"], ((0, 0), (0, HID_PAD - HIDDEN)))                 # (1, 128)
    w3 = jnp.pad(params["w3"], ((0, HID_PAD - HIDDEN), (0, HID_PAD - HIDDEN)))  # (128, 128)
    b3 = jnp.pad(params["b3"], ((0, 0), (0, HID_PAD - HIDDEN)))                 # (1, 128)
    w4 = jnp.pad(params["w4"],
                 ((0, HID_PAD - HIDDEN), (0, OUT_PAD - NUM_CLASSES)))           # (128, 128)
    # Padded logit columns get a huge negative bias so exp() of them is exactly 0
    # and they never win the max -> log_softmax over the 2 real classes is exact.
    b4 = jnp.pad(params["b4"], ((0, 0), (0, OUT_PAD - NUM_CLASSES)),
                 constant_values=NEG_BIG)                                        # (1, 128)
    return w1, b1, w2, b2, w3, b3, w4, b4


@jax.jit
def net_forward(x, params):
    """x: (B, 2) float32. Returns (B, 2) log-probabilities."""
    B = x.shape[0]
    w1, b1, w2, b2, w3, b3, w4, b4 = _pad_params(params)

    # Batch tile: big enough to amortize per-step overhead (~0.35 us/step),
    # small enough to be VMEM-safe everywhere (v7x has 64 MiB VMEM).
    tb = min(MAX_TB, _round_up(B, 8))
    b_pad = _round_up(B, tb)
    if b_pad != B:
        x = jnp.pad(x, ((0, b_pad - B), (0, 0)))
    grid = (b_pad // tb,)

    x_spec = pl.BlockSpec((tb, IN_FEATURES), lambda i: (i, 0))
    out_spec = pl.BlockSpec((tb, OUT_PAD), lambda i: (i, 0))
    # Weights/biases: full-extent blocks, constant index_map -> stay resident.
    w_in = pl.BlockSpec((IN_FEATURES, HID_PAD), lambda i: (0, 0))
    w_hh = pl.BlockSpec((HID_PAD, HID_PAD), lambda i: (0, 0))
    w_out = pl.BlockSpec((HID_PAD, OUT_PAD), lambda i: (0, 0))
    b_h = pl.BlockSpec((1, HID_PAD), lambda i: (0, 0))
    b_o = pl.BlockSpec((1, OUT_PAD), lambda i: (0, 0))

    flops = 2 * b_pad * (IN_FEATURES * HID_PAD + 2 * HID_PAD * HID_PAD
                         + HID_PAD * OUT_PAD)
    transcendentals = b_pad * (OUT_PAD + 1)                      # exp + log
    bytes_accessed = (b_pad * (IN_FEATURES + OUT_PAD) * 4
                      + (IN_FEATURES * HID_PAD + 2 * HID_PAD * HID_PAD
                         + HID_PAD * OUT_PAD + 3 * HID_PAD + OUT_PAD) * 4)

    out_padded = pl.pallas_call(
        mlp_kernel,
        out_shape=jax.ShapeDtypeStruct((b_pad, OUT_PAD), jnp.float32),
        grid=grid,
        in_specs=[x_spec, w_in, b_h, w_hh, b_h, w_hh, b_h, w_out, b_o],
        out_specs=out_spec,
        compiler_params=pltpu.CompilerParams(
            dimension_semantics=("parallel",)),
        cost_estimate=pl.CostEstimate(flops=flops,
                                      transcendentals=transcendentals,
                                      bytes_accessed=bytes_accessed),
    )(x, w1, b1, w2, b2, w3, b3, w4, b4)

    return out_padded[:B, :NUM_CLASSES]


def init_params(key):
    """Mirrors nn.Linear default init (uniform +/- 1/sqrt(fan_in)).

    Weights are stored transposed relative to PyTorch: (in_features, out_features).
    Biases are stored as (1, out_features).
    """
    dims = [(IN_FEATURES, HIDDEN), (HIDDEN, HIDDEN),
            (HIDDEN, HIDDEN), (HIDDEN, NUM_CLASSES)]
    params = {}
    for i, (fan_in, fan_out) in enumerate(dims, start=1):
        key, kw, kb = jax.random.split(key, 3)
        bound = 1.0 / jnp.sqrt(float(fan_in))
        params[f"w{i}"] = jax.random.uniform(
            kw, (fan_in, fan_out), jnp.float32, minval=-bound, maxval=bound)
        params[f"b{i}"] = jax.random.uniform(
            kb, (1, fan_out), jnp.float32, minval=-bound, maxval=bound)
    return params


def reference_forward(x, params):
    """Plain-JAX reference for correctness checking (unpadded params)."""
    h = jax.nn.relu(x @ params["w1"] + params["b1"])
    h = jax.nn.relu(h @ params["w2"] + params["b2"])
    h = jax.nn.relu(h @ params["w3"] + params["b3"])
    logits = h @ params["w4"] + params["b4"]
    return jax.nn.log_softmax(logits, axis=1)


if __name__ == "__main__":
    key = jax.random.PRNGKey(0)
    kp, kx1, kx2 = jax.random.split(key, 3)
    params = init_params(kp)

    # Small example matching the module's forward: batch=8, in_features=2.
    x = jax.random.normal(kx1, (8, IN_FEATURES), jnp.float32)
    out = jax.block_until_ready(net_forward(x, params))
    ref = reference_forward(x, params)
    assert out.shape == (8, NUM_CLASSES)
    assert jnp.allclose(out, ref, atol=1e-5, rtol=1e-5), "mismatch vs reference (B=8)"

    # Also exercise the batch-padding path (B not a multiple of 8).
    x2 = jax.random.normal(kx2, (21, IN_FEATURES), jnp.float32)
    out2 = jax.block_until_ready(net_forward(x2, params))
    ref2 = reference_forward(x2, params)
    assert out2.shape == (21, NUM_CLASSES)
    assert jnp.allclose(out2, ref2, atol=1e-5, rtol=1e-5), "mismatch vs reference (B=21)"

    print("KERNEL_OK")
</pallas_src>

<mosaic_0001>
module attributes {stable_mosaic.version = 11 : i64} {
  func.func @mlp_kernel(%arg0: i32, %arg1: memref<8x2xf32, #tpu.memory_space<vmem>>, %arg2: memref<2x128xf32, #tpu.memory_space<vmem>>, %arg3: memref<1x128xf32, #tpu.memory_space<vmem>>, %arg4: memref<128x128xf32, #tpu.memory_space<vmem>>, %arg5: memref<1x128xf32, #tpu.memory_space<vmem>>, %arg6: memref<128x128xf32, #tpu.memory_space<vmem>>, %arg7: memref<1x128xf32, #tpu.memory_space<vmem>>, %arg8: memref<128x128xf32, #tpu.memory_space<vmem>>, %arg9: memref<1x128xf32, #tpu.memory_space<vmem>>, %arg10: memref<8x128xf32, #tpu.memory_space<vmem>>) attributes {dimension_semantics = [#tpu.dimension_semantics<parallel>], iteration_bounds = array<i64: 1>, scalar_prefetch = 0 : i64, scratch_operands = 0 : i64, tpu.core_type = #tpu.core_type<tc>, window_params = [{transform_indices = @transform_0, window_bounds = array<i64: 8, 2>}, {pipeline_mode = #tpu.pipeline_mode<synchronous>, transform_indices = @transform_1, window_bounds = array<i64: 2, 128>}, {pipeline_mode = #tpu.pipeline_mode<synchronous>, transform_indices = @transform_2, window_bounds = array<i64: 1, 128>}, {pipeline_mode = #tpu.pipeline_mode<synchronous>, transform_indices = @transform_3, window_bounds = array<i64: 128, 128>}, {pipeline_mode = #tpu.pipeline_mode<synchronous>, transform_indices = @transform_4, window_bounds = array<i64: 1, 128>}, {pipeline_mode = #tpu.pipeline_mode<synchronous>, transform_indices = @transform_5, window_bounds = array<i64: 128, 128>}, {pipeline_mode = #tpu.pipeline_mode<synchronous>, transform_indices = @transform_6, window_bounds = array<i64: 1, 128>}, {pipeline_mode = #tpu.pipeline_mode<synchronous>, transform_indices = @transform_7, window_bounds = array<i64: 128, 128>}, {pipeline_mode = #tpu.pipeline_mode<synchronous>, transform_indices = @transform_8, window_bounds = array<i64: 1, 128>}, {transform_indices = @transform_9, window_bounds = array<i64: 8, 128>}]} {
    %c0 = arith.constant 0 : index
    %c0_0 = arith.constant 0 : index
    %0 = vector.load %arg1[%c0, %c0_0] : memref<8x2xf32, #tpu.memory_space<vmem>>, vector<8x2xf32>
    %1 = vector.extract_strided_slice %0 {offsets = [0, 0], sizes = [8, 1], strides = [1, 1]} : vector<8x2xf32> to vector<8x1xf32>
    %c0_1 = arith.constant 0 : index
    %c0_2 = arith.constant 0 : index
    %2 = vector.load %arg2[%c0_1, %c0_2] : memref<2x128xf32, #tpu.memory_space<vmem>>, vector<1x128xf32>
    %3 = vector.broadcast %1 : vector<8x1xf32> to vector<8x128xf32>
    %4 = vector.broadcast %2 : vector<1x128xf32> to vector<8x128xf32>
    %5 = arith.mulf %3, %4 : vector<8x128xf32>
    %6 = vector.extract_strided_slice %0 {offsets = [0, 1], sizes = [8, 1], strides = [1, 1]} : vector<8x2xf32> to vector<8x1xf32>
    %c1 = arith.constant 1 : index
    %c0_3 = arith.constant 0 : index
    %7 = vector.load %arg2[%c1, %c0_3] : memref<2x128xf32, #tpu.memory_space<vmem>>, vector<1x128xf32>
    %8 = vector.broadcast %6 : vector<8x1xf32> to vector<8x128xf32>
    %9 = vector.broadcast %7 : vector<1x128xf32> to vector<8x128xf32>
    %10 = arith.mulf %8, %9 : vector<8x128xf32>
    %11 = arith.addf %5, %10 : vector<8x128xf32>
    %c0_4 = arith.constant 0 : index
    %c0_5 = arith.constant 0 : index
    %12 = vector.load %arg3[%c0_4, %c0_5] : memref<1x128xf32, #tpu.memory_space<vmem>>, vector<1x128xf32>
    %13 = vector.broadcast %12 : vector<1x128xf32> to vector<8x128xf32>
    %14 = arith.addf %11, %13 : vector<8x128xf32>
    %cst = arith.constant 0.000000e+00 : f32
    %15 = vector.broadcast %cst : f32 to vector<8x128xf32>
    %16 = arith.maximumf %14, %15 : vector<8x128xf32>
    %c0_6 = arith.constant 0 : index
    %c0_7 = arith.constant 0 : index
    %17 = vector.load %arg4[%c0_6, %c0_7] : memref<128x128xf32, #tpu.memory_space<vmem>>, vector<128x128xf32>
    %cst_8 = arith.constant dense<0.000000e+00> : vector<8x128xf32>
    %18 = tpu.matmul %16, %17, %cst_8 {dimension_numbers = #tpu.dot_dimension_numbers<[1], [0], [0], [1], [0, 0, 1, 1], [], []>} : vector<8x128xf32>, vector<128x128xf32>, vector<8x128xf32> -> vector<8x128xf32>
    %c0_9 = arith.constant 0 : index
    %c0_10 = arith.constant 0 : index
    %19 = vector.load %arg5[%c0_9, %c0_10] : memref<1x128xf32, #tpu.memory_space<vmem>>, vector<1x128xf32>
    %20 = vector.broadcast %19 : vector<1x128xf32> to vector<8x128xf32>
    %21 = arith.addf %18, %20 : vector<8x128xf32>
    %cst_11 = arith.constant 0.000000e+00 : f32
    %22 = vector.broadcast %cst_11 : f32 to vector<8x128xf32>
    %23 = arith.maximumf %21, %22 : vector<8x128xf32>
    %c0_12 = arith.constant 0 : index
    %c0_13 = arith.constant 0 : index
    %24 = vector.load %arg6[%c0_12, %c0_13] : memref<128x128xf32, #tpu.memory_space<vmem>>, vector<128x128xf32>
    %cst_14 = arith.constant dense<0.000000e+00> : vector<8x128xf32>
    %25 = tpu.matmul %23, %24, %cst_14 {dimension_numbers = #tpu.dot_dimension_numbers<[1], [0], [0], [1], [0, 0, 1, 1], [], []>} : vector<8x128xf32>, vector<128x128xf32>, vector<8x128xf32> -> vector<8x128xf32>
    %c0_15 = arith.constant 0 : index
    %c0_16 = arith.constant 0 : index
    %26 = vector.load %arg7[%c0_15, %c0_16] : memref<1x128xf32, #tpu.memory_space<vmem>>, vector<1x128xf32>
    %27 = vector.broadcast %26 : vector<1x128xf32> to vector<8x128xf32>
    %28 = arith.addf %25, %27 : vector<8x128xf32>
    %cst_17 = arith.constant 0.000000e+00 : f32
    %29 = vector.broadcast %cst_17 : f32 to vector<8x128xf32>
    %30 = arith.maximumf %28, %29 : vector<8x128xf32>
    %c0_18 = arith.constant 0 : index
    %c0_19 = arith.constant 0 : index
    %31 = vector.load %arg8[%c0_18, %c0_19] : memref<128x128xf32, #tpu.memory_space<vmem>>, vector<128x128xf32>
    %cst_20 = arith.constant dense<0.000000e+00> : vector<8x128xf32>
    %32 = tpu.matmul %30, %31, %cst_20 {dimension_numbers = #tpu.dot_dimension_numbers<[1], [0], [0], [1], [0, 0, 1, 1], [], []>} : vector<8x128xf32>, vector<128x128xf32>, vector<8x128xf32> -> vector<8x128xf32>
    %c0_21 = arith.constant 0 : index
    %c0_22 = arith.constant 0 : index
    %33 = vector.load %arg9[%c0_21, %c0_22] : memref<1x128xf32, #tpu.memory_space<vmem>>, vector<1x128xf32>
    %34 = vector.broadcast %33 : vector<1x128xf32> to vector<8x128xf32>
    %35 = arith.addf %32, %34 : vector<8x128xf32>
    %cst_23 = arith.constant dense<0xFF800000> : vector<8xf32>
    %36 = vector.multi_reduction <maximumf>, %35, %cst_23 [1] : vector<8x128xf32> to vector<8xf32>
    %37 = vector.shape_cast %36 : vector<8xf32> to vector<8x1xf32>
    %38 = vector.broadcast %37 : vector<8x1xf32> to vector<8x128xf32>
    %39 = arith.subf %35, %38 : vector<8x128xf32>
    %40 = math.exp %39 : vector<8x128xf32>
    %cst_24 = arith.constant dense<0.000000e+00> : vector<8xf32>
    %41 = vector.multi_reduction <add>, %40, %cst_24 [1] : vector<8x128xf32> to vector<8xf32>
    %42 = vector.shape_cast %41 : vector<8xf32> to vector<8x1xf32>
    %43 = math.log %42 : vector<8x1xf32>
    %44 = vector.broadcast %43 : vector<8x1xf32> to vector<8x128xf32>
    %45 = arith.subf %39, %44 : vector<8x128xf32>
    %c0_25 = arith.constant 0 : index
    %c0_26 = arith.constant 0 : index
    %46 = vector.load %arg10[%c0_25, %c0_26] : memref<8x128xf32, #tpu.memory_space<vmem>>, vector<8x128xf32>
    tpu.vector_store %arg10[%c0_25, %c0_26], %45 {strides = array<i32>} : memref<8x128xf32, #tpu.memory_space<vmem>>, vector<8x128xf32>,
    return
  }
  func.func @transform_0(%arg0: i32) -> (i32, i32) {
    %c0_i32 = arith.constant 0 : i32
    %c0_i32_0 = arith.constant 0 : i32
    return %arg0, %c0_i32 : i32, i32
  }
  func.func @transform_1(%arg0: i32) -> (i32, i32) {
    %c0_i32 = arith.constant 0 : i32
    %c0_i32_0 = arith.constant 0 : i32
    %c0_i32_1 = arith.constant 0 : i32
    return %c0_i32, %c0_i32_0 : i32, i32
  }
  func.func @transform_2(%arg0: i32) -> (i32, i32) {
    %c0_i32 = arith.constant 0 : i32
    %c0_i32_0 = arith.constant 0 : i32
    %c0_i32_1 = arith.constant 0 : i32
    return %c0_i32, %c0_i32_0 : i32, i32
  }
  func.func @transform_3(%arg0: i32) -> (i32, i32) {
    %c0_i32 = arith.constant 0 : i32
    %c0_i32_0 = arith.constant 0 : i32
    %c0_i32_1 = arith.constant 0 : i32
    return %c0_i32, %c0_i32_0 : i32, i32
  }
  func.func @transform_4(%arg0: i32) -> (i32, i32) {
    %c0_i32 = arith.constant 0 : i32
    %c0_i32_0 = arith.constant 0 : i32
    %c0_i32_1 = arith.constant 0 : i32
    return %c0_i32, %c0_i32_0 : i32, i32
  }
  func.func @transform_5(%arg0: i32) -> (i32, i32) {
    %c0_i32 = arith.constant 0 : i32
    %c0_i32_0 = arith.constant 0 : i32
    %c0_i32_1 = arith.constant 0 : i32
    return %c0_i32, %c0_i32_0 : i32, i32
  }
  func.func @transform_6(%arg0: i32) -> (i32, i32) {
    %c0_i32 = arith.constant 0 : i32
    %c0_i32_0 = arith.constant 0 : i32
    %c0_i32_1 = arith.constant 0 : i32
    return %c0_i32, %c0_i32_0 : i32, i32
  }
  func.func @transform_7(%arg0: i32) -> (i32, i32) {
    %c0_i32 = arith.constant 0 : i32
    %c0_i32_0 = arith.constant 0 : i32
    %c0_i32_1 = arith.constant 0 : i32
    return %c0_i32, %c0_i32_0 : i32, i32
  }
  func.func @transform_8(%arg0: i32) -> (i32, i32) {
    %c0_i32 = arith.constant 0 : i32
    %c0_i32_0 = arith.constant 0 : i32
    %c0_i32_1 = arith.constant 0 : i32
    return %c0_i32, %c0_i32_0 : i32, i32
  }
  func.func @transform_9(%arg0: i32) -> (i32, i32) {
    %c0_i32 = arith.constant 0 : i32
    %c0_i32_0 = arith.constant 0 : i32
    return %arg0, %c0_i32 : i32, i32
  }
}

</mosaic_0001>

<llo_original>
// kernel: net_forward.1
$region0: #{net_forward.1}
  #allocation0 [shape = 'u32[]', space=smem, size = 0x4, offset = 0x4, fixed_abs, tag = 'smem constant byte address 0x4 - core index']
  #allocation1 [shape = 'u32[72,128]{1,0:T(1,128)}', space=vmem, size = 0x9000, scoped, tag = 'internal scratch']
  %s0 = inlined_call_operand.vmem [shape: f32[8,2], index: 0, kind: input, shape index: {}]
  %s1 = inlined_call_operand.vmem [shape: f32[2,128], index: 1, kind: input, shape index: {}]
  %s2 = inlined_call_operand.vmem [shape: f32[1,128], index: 2, kind: input, shape index: {}]
  %s3 = inlined_call_operand.vmem [shape: f32[128,128], index: 3, kind: input, shape index: {}]
  %s4 = inlined_call_operand.vmem [shape: f32[1,128], index: 4, kind: input, shape index: {}]
  %s5 = inlined_call_operand.vmem [shape: f32[128,128], index: 5, kind: input, shape index: {}]
  %s6 = inlined_call_operand.vmem [shape: f32[1,128], index: 6, kind: input, shape index: {}]
  %s7 = inlined_call_operand.vmem [shape: f32[128,128], index: 7, kind: input, shape index: {}]
  %s8 = inlined_call_operand.vmem [shape: f32[1,128], index: 8, kind: input, shape index: {}]
  %s9 = inlined_call_operand.vmem [shape: f32[8,128], index: 9, kind: output, shape index: {}]
  %s10 = sld [smem:[#allocation0]]
  $region46: #{net_forward.1} parent=0
    _
  %s12 = ssub.s32 1, %s10
  %s13 = scalar_select 0, %s12, %s10
  // Predicated region
  $region2: #{net_forward.1} parent=0 // pred_check
    _
  $region3: #{net_forward.1} parent=0 // pred_check_branch
    %15 = sbr.rel (0) target = $region5
  $region4: #{net_forward.1} parent=0 // pred_region
    _
  $region5: #{net_forward.1} parent=0 // pred_fallthru
    _
  // Predicated region
  $region6: #{net_forward.1} parent=0 // pred_check
    _
  $region7: #{net_forward.1} parent=0 // pred_check_branch
    %17 = sbr.rel (0) target = $region9
  $region8: #{net_forward.1} parent=0 // pred_region
    _
  $region9: #{net_forward.1} parent=0 // pred_fallthru
    _
  // Predicated region
  $region10: #{net_forward.1} parent=0 // pred_check
    _
  $region11: #{net_forward.1} parent=0 // pred_check_branch
    %19 = sbr.rel (0) target = $region13
  $region12: #{net_forward.1} parent=0 // pred_region
    _
  $region13: #{net_forward.1} parent=0 // pred_fallthru
    _
  // Predicated region
  $region14: #{net_forward.1} parent=0 // pred_check
    _
  $region15: #{net_forward.1} parent=0 // pred_check_branch
    %21 = sbr.rel (0) target = $region17
  $region16: #{net_forward.1} parent=0 // pred_region
    _
  $region17: #{net_forward.1} parent=0 // pred_fallthru
    _
  // Predicated region
  $region18: #{net_forward.1} parent=0 // pred_check
    _
  $region19: #{net_forward.1} parent=0 // pred_check_branch
    %23 = sbr.rel (0) target = $region21
  $region20: #{net_forward.1} parent=0 // pred_region
    _
  $region21: #{net_forward.1} parent=0 // pred_fallthru
    _
  // Predicated region
  $region22: #{net_forward.1} parent=0 // pred_check
    _
  $region23: #{net_forward.1} parent=0 // pred_check_branch
    %25 = sbr.rel (0) target = $region25
  $region24: #{net_forward.1} parent=0 // pred_region
    _
  $region25: #{net_forward.1} parent=0 // pred_fallthru
    _
  // Predicated region
  $region26: #{net_forward.1} parent=0 // pred_check
    _
  $region27: #{net_forward.1} parent=0 // pred_check_branch
    %27 = sbr.rel (0) target = $region29
  $region28: #{net_forward.1} parent=0 // pred_region
    _
  $region29: #{net_forward.1} parent=0 // pred_fallthru
    _
  // Predicated region
  $region30: #{net_forward.1} parent=0 // pred_check
    _
  $region31: #{net_forward.1} parent=0 // pred_check_branch
    %29 = sbr.rel (0) target = $region33
  $region32: #{net_forward.1} parent=0 // pred_region
    _
  $region33: #{net_forward.1} parent=0 // pred_fallthru
    _
  // Predicated region
  $region34: #{net_forward.1} parent=0 // pred_check
    _
  $region35: #{net_forward.1} parent=0 // pred_check_branch
    %31 = sbr.rel (0) target = $region37
  $region36: #{net_forward.1} parent=0 // pred_region
    _
  $region37: #{net_forward.1} parent=0 // pred_fallthru
    _
  %v32 = vld [vmem:[%s0] sm:$0xff]
  %v33 = vld [vmem:[%s1] sm:$0x1]
  %35 = vset.pattern.permute.xlu0 0
  %36 = vperm.xlu0 %35, %v32
  %v37 = vpop.permute.xlu0 %36
  %v39 = vperm.slane %v33, 0
  %v40 = vmul.f32 %v37, %v39
  %v41 = vld [vmem:[%s1 + $0x1] sm:$0x1]
  %42 = vset.pattern.permute.xlu0 1
  %43 = vperm.xlu0 %42, %v32
  %v44 = vpop.permute.xlu0 %43
  %v46 = vperm.slane %v41, 0
  %v47 = vmul.f32 %v44, %v46
  %v48 = vadd.f32 %v40, %v47
  %v49 = vld [vmem:[%s2] sm:$0x1]
  %v51 = vperm.slane %v49, 0
  %v53 = vadd.f32 %v48, %v51
  %v54 = vmax.f32 %v53, 0.0
  %v55 = vld [vmem:[%s3] sm:$0xff]
  %v56 = vld [vmem:[%s3 + $0x8] sm:$0xff]
  %v57 = vld [vmem:[%s3 + $0x10] sm:$0xff]
  %v58 = vld [vmem:[%s3 + $0x18] sm:$0xff]
  %v59 = vld [vmem:[%s3 + $0x20] sm:$0xff]
  %v60 = vld [vmem:[%s3 + $0x28] sm:$0xff]
  %v61 = vld [vmem:[%s3 + $0x30] sm:$0xff]
  %v62 = vld [vmem:[%s3 + $0x38] sm:$0xff]
  %v63 = vld [vmem:[%s3 + $0x40] sm:$0xff]
  %v64 = vld [vmem:[%s3 + $0x48] sm:$0xff]
  %v65 = vld [vmem:[%s3 + $0x50] sm:$0xff]
  %v66 = vld [vmem:[%s3 + $0x58] sm:$0xff]
  %v67 = vld [vmem:[%s3 + $0x60] sm:$0xff]
  %v68 = vld [vmem:[%s3 + $0x68] sm:$0xff]
  %v69 = vld [vmem:[%s3 + $0x70] sm:$0xff]
  %v70 = vld [vmem:[%s3 + $0x78] sm:$0xff]
  %v71 = vld [vmem:[%s4] sm:$0x1]
  %v73 = vperm.slane %v71, 0
  %75 = vmatpush.msra.mxu0 %v70
  %76 = vmatpush.msra.mxu0 %v69
  %77 = vmatpush.msra.mxu0 %v68
  %78 = vmatpush.msra.mxu0 %v67
  %79 = vmatpush.msra.mxu0 %v66
  %80 = vmatpush.msra.mxu0 %v65
  %81 = vmatpush.msra.mxu0 %v64
  %82 = vmatpush.msra.mxu0 %v63
  %83 = vmatpush.msra.mxu0 %v62
  %84 = vmatpush.msra.mxu0 %v61
  %85 = vmatpush.msra.mxu0 %v60
  %86 = vmatpush.msra.mxu0 %v59
  %87 = vmatpush.msra.mxu0 %v58
  %88 = vmatpush.msra.mxu0 %v57
  %89 = vmatpush.msra.mxu0 %v56
  %90 = vmatpush.msra.mxu0 %v55
  %91 = vmatmul.f32.gmra.mxu0 %v54
  %v92 = vpop.f32.mrf.mxu0
  %v93 = vadd.f32 %v73, %v92
  %94 = vdwg.mxu0
  %v95 = vmax.f32 %v93, 0.0
  %v96 = vld [vmem:[%s5] sm:$0xff]
  %v97 = vld [vmem:[%s5 + $0x8] sm:$0xff]
  %v98 = vld [vmem:[%s5 + $0x10] sm:$0xff]
  %v99 = vld [vmem:[%s5 + $0x18] sm:$0xff]
  %v100 = vld [vmem:[%s5 + $0x20] sm:$0xff]
  %v101 = vld [vmem:[%s5 + $0x28] sm:$0xff]
  %v102 = vld [vmem:[%s5 + $0x30] sm:$0xff]
  %v103 = vld [vmem:[%s5 + $0x38] sm:$0xff]
  %v104 = vld [vmem:[%s5 + $0x40] sm:$0xff]
  %v105 = vld [vmem:[%s5 + $0x48] sm:$0xff]
  %v106 = vld [vmem:[%s5 + $0x50] sm:$0xff]
  %v107 = vld [vmem:[%s5 + $0x58] sm:$0xff]
  %v108 = vld [vmem:[%s5 + $0x60] sm:$0xff]
  %v109 = vld [vmem:[%s5 + $0x68] sm:$0xff]
  %v110 = vld [vmem:[%s5 + $0x70] sm:$0xff]
  %v111 = vld [vmem:[%s5 + $0x78] sm:$0xff]
  %v112 = vld [vmem:[%s6] sm:$0x1]
  %v114 = vperm.slane %v112, 0
  %116 = vmatpush.msra.mxu0 %v111
  %117 = vmatpush.msra.mxu0 %v110
  %118 = vmatpush.msra.mxu0 %v109
  %119 = vmatpush.msra.mxu0 %v108
  %120 = vmatpush.msra.mxu0 %v107
  %121 = vmatpush.msra.mxu0 %v106
  %122 = vmatpush.msra.mxu0 %v105
  %123 = vmatpush.msra.mxu0 %v104
  %124 = vmatpush.msra.mxu0 %v103
  %125 = vmatpush.msra.mxu0 %v102
  %126 = vmatpush.msra.mxu0 %v101
  %127 = vmatpush.msra.mxu0 %v100
  %128 = vmatpush.msra.mxu0 %v99
  %129 = vmatpush.msra.mxu0 %v98
  %130 = vmatpush.msra.mxu0 %v97
  %131 = vmatpush.msra.mxu0 %v96
  %132 = vmatmul.f32.gmra.mxu0 %v95
  %v133 = vpop.f32.mrf.mxu0
  %v134 = vadd.f32 %v114, %v133
  %135 = vdwg.mxu0
  %v136 = vmax.f32 %v134, 0.0
  %v137 = vld [vmem:[%s7] sm:$0xff]
  %v138 = vld [vmem:[%s7 + $0x8] sm:$0xff]
  %v139 = vld [vmem:[%s7 + $0x10] sm:$0xff]
  %v140 = vld [vmem:[%s7 + $0x18] sm:$0xff]
  %v141 = vld [vmem:[%s7 + $0x20] sm:$0xff]
  %v142 = vld [vmem:[%s7 + $0x28] sm:$0xff]
  %v143 = vld [vmem:[%s7 + $0x30] sm:$0xff]
  %v144 = vld [vmem:[%s7 + $0x38] sm:$0xff]
  %v145 = vld [vmem:[%s7 + $0x40] sm:$0xff]
  %v146 = vld [vmem:[%s7 + $0x48] sm:$0xff]
  %v147 = vld [vmem:[%s7 + $0x50] sm:$0xff]
  %v148 = vld [vmem:[%s7 + $0x58] sm:$0xff]
  %v149 = vld [vmem:[%s7 + $0x60] sm:$0xff]
  %v150 = vld [vmem:[%s7 + $0x68] sm:$0xff]
  %v151 = vld [vmem:[%s7 + $0x70] sm:$0xff]
  %v152 = vld [vmem:[%s7 + $0x78] sm:$0xff]
  %v153 = vld [vmem:[%s8] sm:$0x1]
  %v155 = vperm.slane %v153, 0
  %157 = vmatpush.msra.mxu0 %v152
  %158 = vmatpush.msra.mxu0 %v151
  %159 = vmatpush.msra.mxu0 %v150
  %160 = vmatpush.msra.mxu0 %v149
  %161 = vmatpush.msra.mxu0 %v148
  %162 = vmatpush.msra.mxu0 %v147
  %163 = vmatpush.msra.mxu0 %v146
  %164 = vmatpush.msra.mxu0 %v145
  %165 = vmatpush.msra.mxu0 %v144
  %166 = vmatpush.msra.mxu0 %v143
  %167 = vmatpush.msra.mxu0 %v142
  %168 = vmatpush.msra.mxu0 %v141
  %169 = vmatpush.msra.mxu0 %v140
  %170 = vmatpush.msra.mxu0 %v139
  %171 = vmatpush.msra.mxu0 %v138
  %172 = vmatpush.msra.mxu0 %v137
  %173 = vmatmul.f32.gmra.mxu0 %v136
  %v174 = vpop.f32.mrf.mxu0
  %v175 = vadd.f32 %v155, %v174
  %176 = vdwg.mxu0
  %177 = vmax.xlane.f32.xlu0 %v175
  %v178 = vpop.xlane.xlu0 %177
  %v179 = vsub.f32 %v175, %v178
  %v180 = vmul.f32 %v179, 1.442695
  %v181 = vpow.pop %v180
  %182 = vadd.xlane.f32.xlu0 %v181
  %v183 = vpop.xlane.xlu0 %182
  %v184 = vlog2.pop %v183
  %v185 = vmul.f32 %v184, 0.6931472
  %v186 = vsub.f32 %v179, %v185
  %187 = vst [vmem:[%s9] sm:$0xff] %v186
  // Predicated region
  $region38: #{net_forward.1} parent=0 // pred_check
    _
  $region39: #{net_forward.1} parent=0 // pred_check_branch
    %189 = sbr.rel (0) target = $region41
  $region40: #{net_forward.1} parent=0 // pred_region
    _
  $region41: #{net_forward.1} parent=0 // pred_fallthru
    _
  // Predicated region
  $region42: #{net_forward.1} parent=0 // pred_check
    _
  $region43: #{net_forward.1} parent=0 // pred_check_branch
    %191 = sbr.rel (0) target = $region45
  $region44: #{net_forward.1} parent=0 // pred_region
    _
  $region45: #{net_forward.1} parent=0 // pred_fallthru
    _

</llo_original>
